<compile_context>
chip_gen: v7x
topology: tpu7x:2x2x1
jax: 0.10.0
libtpu: 0.0.40
codegen_flags: <defaults>
</compile_context>

<pallas_src>
import math
import functools

import jax
import jax.numpy as jnp
from jax.experimental import pallas as pl
from jax.experimental.pallas import tpu as pltpu


def _round_up(x, m):
    return ((x + m - 1) // m) * m


def _pick_tile(total, unit, t_max):
    """Largest multiple-of-`unit` divisor of `total` that is <= t_max.

    `total` must already be a multiple of `unit`. Keeps padding minimal while
    keeping tiles lane-dense."""
    q = total // unit
    best = 1
    for d in range(1, q + 1):
        if q % d == 0 and d * unit <= t_max:
            best = d
    return best * unit


def _linear_lora_kernel(x_ref, w_ref, bias_ref, a_ref, b_ref, o_ref,
                        acc_ref, xa_ref, *, alpha):
    # x_ref    : (tm, tk)          input tile
    # w_ref    : (tn, tk)          W tile, native (dim_out, dim_in) layout
    # bias_ref : (1, tn)
    # a_ref    : (tk, r_pad)       LoRA A tile (rank zero-padded to 128)
    # b_ref    : (r_pad, tn)       LoRA B tile
    # o_ref    : (tm, tn)
    # acc_ref  : (tm, tn)   f32    base accumulator (VMEM scratch)
    # xa_ref   : (tm, r_pad) f32   x@A accumulator  (VMEM scratch)
    k = pl.program_id(2)

    @pl.when(k == 0)
    def _():
        acc_ref[...] = jnp.zeros_like(acc_ref)
        xa_ref[...] = jnp.zeros_like(xa_ref)

    x = x_ref[...]
    # Base path: x @ W.T without materializing W.T in HBM (contract last dims).
    acc_ref[...] += jax.lax.dot_general(
        x, w_ref[...],
        dimension_numbers=(((1,), (1,)), ((), ())),
        preferred_element_type=jnp.float32)
    # LoRA left factor: x @ A (small, lane-dense rank intermediate).
    xa_ref[...] += jnp.dot(x, a_ref[...], preferred_element_type=jnp.float32)

    @pl.when(k == pl.num_programs(2) - 1)
    def _():
        xa = (xa_ref[...] * alpha).astype(b_ref.dtype)  # scale the small (tm, r) tile
        lora = jnp.dot(xa, b_ref[...], preferred_element_type=jnp.float32)
        o_ref[...] = (acc_ref[...] + lora
                      + bias_ref[...].astype(jnp.float32)).astype(o_ref.dtype)


def linear_lora_forward(x, W, bias, A, B, alpha, *, tm=256, tn=512, tk=1024):
    """y = x @ W.T + bias + alpha * (x @ A @ B), fused in one Pallas kernel."""
    orig_shape = x.shape
    dim_in = orig_shape[-1]
    x2 = x.reshape(-1, dim_in)
    M = x2.shape[0]
    dim_out, dim_in_w = W.shape
    assert dim_in_w == dim_in
    rank = A.shape[1]
    assert A.shape == (dim_in, rank)
    assert B.shape == (rank, dim_out)
    assert bias.shape == (dim_out,)

    dtype = x2.dtype
    bpe = jnp.dtype(dtype).itemsize
    sub = {4: 8, 2: 16, 1: 32}.get(bpe, 8)   # sublane multiple for this dtype

    # ---- tile sizes & zero padding (no divisibility requirements) ----
    tm_eff = min(_round_up(max(tm, sub), sub), _round_up(M, sub))
    M_pad = _round_up(M, tm_eff)

    N_pad = _round_up(dim_out, 128)
    tn_eff = _pick_tile(N_pad, 128, max(tn, 128))

    tk_max = max(tk, 128)
    if dim_in <= tk_max:
        tk_eff = dim_in        # single K step; full-extent block, no K padding
        K_pad = dim_in
    else:
        K_pad = _round_up(dim_in, 128)
        tk_eff = _pick_tile(K_pad, 128, tk_max)

    r_pad = _round_up(rank, 128)   # lane-dense rank intermediate

    xp = x2
    if M_pad != M or K_pad != dim_in:
        xp = jnp.pad(x2, ((0, M_pad - M), (0, K_pad - dim_in)))
    Wp = W.astype(dtype)
    if N_pad != dim_out or K_pad != dim_in:
        Wp = jnp.pad(Wp, ((0, N_pad - dim_out), (0, K_pad - dim_in)))
    biasp = bias.astype(dtype)
    if N_pad != dim_out:
        biasp = jnp.pad(biasp, (0, N_pad - dim_out))
    biasp = biasp.reshape(1, N_pad)
    Ap = A.astype(dtype)
    if K_pad != dim_in or r_pad != rank:
        Ap = jnp.pad(Ap, ((0, K_pad - dim_in), (0, r_pad - rank)))
    Bp = B.astype(dtype)
    if r_pad != rank or N_pad != dim_out:
        Bp = jnp.pad(Bp, ((0, r_pad - rank), (0, N_pad - dim_out)))

    grid = (M_pad // tm_eff, N_pad // tn_eff, K_pad // tk_eff)

    # ---- VMEM budget: double-buffered tiles + f32 accumulators + slack ----
    in_tile_bytes = bpe * (tm_eff * tk_eff + tn_eff * tk_eff + tn_eff
                           + tk_eff * r_pad + r_pad * tn_eff)
    out_tile_bytes = bpe * tm_eff * tn_eff
    scratch_bytes = 4 * (tm_eff * tn_eff + tm_eff * r_pad)
    need = 2 * (in_tile_bytes + out_tile_bytes) + scratch_bytes
    vmem_limit = int(min(64 * 1024 * 1024, max(2 * need, 16 * 1024 * 1024)))

    # ---- cost hint: small FLOPs, big bytes -> mem-bound ----
    flops = 2 * M * dim_in * dim_out + 2 * M * rank * (dim_in + dim_out)
    bytes_accessed = bpe * (
        M * dim_in + M * dim_out + dim_out * dim_in
        + dim_in * rank + rank * dim_out + dim_out
    )
    cost = pl.CostEstimate(flops=flops, transcendentals=0,
                           bytes_accessed=bytes_accessed)

    kernel = functools.partial(_linear_lora_kernel, alpha=float(alpha))

    out = pl.pallas_call(
        kernel,
        out_shape=jax.ShapeDtypeStruct((M_pad, N_pad), dtype),
        grid_spec=pltpu.PrefetchScalarGridSpec(
            num_scalar_prefetch=0,
            grid=grid,
            in_specs=[
                pl.BlockSpec((tm_eff, tk_eff), lambda i, j, k: (i, k)),  # x tile
                pl.BlockSpec((tn_eff, tk_eff), lambda i, j, k: (j, k)),  # W tile (native)
                pl.BlockSpec((1, tn_eff), lambda i, j, k: (0, j)),       # bias tile
                pl.BlockSpec((tk_eff, r_pad), lambda i, j, k: (k, 0)),   # A tile
                pl.BlockSpec((r_pad, tn_eff), lambda i, j, k: (0, j)),   # B tile
            ],
            out_specs=pl.BlockSpec((tm_eff, tn_eff), lambda i, j, k: (i, j)),
            scratch_shapes=[
                pltpu.VMEM((tm_eff, tn_eff), jnp.float32),   # base accumulator
                pltpu.VMEM((tm_eff, r_pad), jnp.float32),    # x@A accumulator
            ],
        ),
        compiler_params=pltpu.CompilerParams(
            dimension_semantics=("parallel", "parallel", "arbitrary"),
            vmem_limit_bytes=vmem_limit,
        ),
        cost_estimate=cost,
    )(xp, Wp, biasp, Ap, Bp)

    y = out[:M, :dim_out]
    return y.reshape(*orig_shape[:-1], dim_out)


if __name__ == "__main__":
    # Small shapes consistent with LinearLoRA's forward.
    M, dim_in, rank, dim_out = 16, 32, 8, 64
    alpha = 2.0

    key = jax.random.PRNGKey(0)
    kx, kw, kbias, ka, kb, kx2, kw2, kb2, ka2, kbb2, kx3 = jax.random.split(key, 11)

    x = jax.random.normal(kx, (M, dim_in), dtype=jnp.float32)

    # Frozen nn.Linear parameters.
    W = jax.random.normal(kw, (dim_out, dim_in), dtype=jnp.float32) / math.sqrt(dim_in)
    bias = 0.1 * jax.random.normal(kbias, (dim_out,), dtype=jnp.float32)

    # LoRALayer init: A ~ kaiming_uniform_(a=sqrt(5)) -> U(-1/sqrt(rank), 1/sqrt(rank))
    # (fan_in = A.size(1) = rank for a 2-D tensor); B = zeros.
    bound = 1.0 / math.sqrt(rank)
    A = jax.random.uniform(ka, (dim_in, rank), dtype=jnp.float32,
                           minval=-bound, maxval=bound)
    B = jnp.zeros((rank, dim_out), dtype=jnp.float32)

    def ref(x_, W_, bias_, A_, B_, alpha_):
        return x_ @ W_.T + bias_ + alpha_ * (x_ @ A_ @ B_)

    # Faithful init (B = 0): output equals the frozen linear.
    y = linear_lora_forward(x, W, bias, A, B, alpha)
    jax.block_until_ready(y)
    assert jnp.allclose(y, ref(x, W, bias, A, B, alpha), atol=1e-3, rtol=1e-3)

    # Non-zero B: exercise the full LoRA compute path.
    B_test = 0.1 * jax.random.normal(kb, (rank, dim_out), dtype=jnp.float32)
    y_test = linear_lora_forward(x, W, bias, A, B_test, alpha)
    jax.block_until_ready(y_test)
    assert jnp.allclose(y_test, ref(x, W, bias, A, B_test, alpha),
                        atol=1e-3, rtol=1e-3)

    # Non-divisible batch with a 3-D input (exercises padding / reshape path).
    x_odd = jax.random.normal(kx2, (3, 7, dim_in), dtype=jnp.float32)  # 21 rows
    y_odd = linear_lora_forward(x_odd, W, bias, A, B_test, alpha)
    jax.block_until_ready(y_odd)
    y_odd_ref = ref(x_odd.reshape(-1, dim_in), W, bias, A, B_test, alpha)
    assert jnp.allclose(y_odd.reshape(-1, dim_out), y_odd_ref, atol=1e-3, rtol=1e-3)

    # Exercise the K-reduction (dim_in-tiled) accumulator path explicitly.
    dim_in2, dim_out2, rank2 = 256, 384, 4
    x4 = jax.random.normal(kx3, (M, dim_in2), dtype=jnp.float32)
    W2 = jax.random.normal(kw2, (dim_out2, dim_in2), dtype=jnp.float32) / math.sqrt(dim_in2)
    bias2 = 0.1 * jax.random.normal(kb2, (dim_out2,), dtype=jnp.float32)
    A2 = jax.random.uniform(ka2, (dim_in2, rank2), dtype=jnp.float32,
                            minval=-1.0 / math.sqrt(rank2), maxval=1.0 / math.sqrt(rank2))
    B2 = 0.1 * jax.random.normal(kbb2, (rank2, dim_out2), dtype=jnp.float32)
    y4 = linear_lora_forward(x4, W2, bias2, A2, B2, alpha, tm=128, tn=128, tk=128)
    jax.block_until_ready(y4)
    assert jnp.allclose(y4, ref(x4, W2, bias2, A2, B2, alpha), atol=1e-3, rtol=1e-3)

    print("KERNEL_OK")
</pallas_src>

<mosaic_0001>
module attributes {stable_mosaic.version = 11 : i64} {
  func.func @_linear_lora_kernel(%arg0: i32, %arg1: i32, %arg2: i32, %arg3: memref<16x32xf32, #tpu.memory_space<vmem>>, %arg4: memref<128x32xf32, #tpu.memory_space<vmem>>, %arg5: memref<1x128xf32, #tpu.memory_space<vmem>>, %arg6: memref<32x128xf32, #tpu.memory_space<vmem>>, %arg7: memref<128x128xf32, #tpu.memory_space<vmem>>, %arg8: memref<16x128xf32, #tpu.memory_space<vmem>>, %arg9: memref<16x128xf32, #tpu.memory_space<vmem>>, %arg10: memref<16x128xf32, #tpu.memory_space<vmem>>) attributes {dimension_semantics = [#tpu.dimension_semantics<parallel>, #tpu.dimension_semantics<parallel>, #tpu.dimension_semantics<arbitrary>], iteration_bounds = array<i64: 1, 1, 1>, scalar_prefetch = 0 : i64, scratch_operands = 2 : i64, tpu.core_type = #tpu.core_type<tc>, window_params = [{transform_indices = @transform_0, window_bounds = array<i64: 16, 32>}, {transform_indices = @transform_1, window_bounds = array<i64: 128, 32>}, {transform_indices = @transform_2, window_bounds = array<i64: 1, 128>}, {transform_indices = @transform_3, window_bounds = array<i64: 32, 128>}, {transform_indices = @transform_4, window_bounds = array<i64: 128, 128>}, {transform_indices = @transform_5, window_bounds = array<i64: 16, 128>}]} {
    %c0_i32 = arith.constant 0 : i32
    %0 = arith.cmpi eq, %arg2, %c0_i32 : i32
    %1 = arith.extui %0 : i1 to i32
    %c0_i32_0 = arith.constant 0 : i32
    %2 = arith.cmpi ne, %1, %c0_i32_0 : i32
    scf.if %2 {
      %cst_17 = arith.constant 0.000000e+00 : f32
      %17 = vector.broadcast %cst_17 : f32 to vector<16x128xf32>
      %c0_18 = arith.constant 0 : index
      %c0_19 = arith.constant 0 : index
      %18 = vector.load %arg9[%c0_18, %c0_19] : memref<16x128xf32, #tpu.memory_space<vmem>>, vector<16x128xf32>
      tpu.vector_store %arg9[%c0_18, %c0_19], %17 {strides = array<i32>} : memref<16x128xf32, #tpu.memory_space<vmem>>, vector<16x128xf32>,
      %cst_20 = arith.constant 0.000000e+00 : f32
      %19 = vector.broadcast %cst_20 : f32 to vector<16x128xf32>
      %c0_21 = arith.constant 0 : index
      %c0_22 = arith.constant 0 : index
      %20 = vector.load %arg10[%c0_21, %c0_22] : memref<16x128xf32, #tpu.memory_space<vmem>>, vector<16x128xf32>
      tpu.vector_store %arg10[%c0_21, %c0_22], %19 {strides = array<i32>} : memref<16x128xf32, #tpu.memory_space<vmem>>, vector<16x128xf32>,
    } else {
    }
    %c0 = arith.constant 0 : index
    %c0_1 = arith.constant 0 : index
    %3 = vector.load %arg3[%c0, %c0_1] : memref<16x32xf32, #tpu.memory_space<vmem>>, vector<16x32xf32>
    %c0_2 = arith.constant 0 : index
    %c0_3 = arith.constant 0 : index
    %4 = vector.load %arg9[%c0_2, %c0_3] : memref<16x128xf32, #tpu.memory_space<vmem>>, vector<16x128xf32>
    %c0_4 = arith.constant 0 : index
    %c0_5 = arith.constant 0 : index
    %5 = vector.load %arg4[%c0_4, %c0_5] : memref<128x32xf32, #tpu.memory_space<vmem>>, vector<128x32xf32>
    %cst = arith.constant dense<0.000000e+00> : vector<16x128xf32>
    %6 = tpu.matmul %3, %5, %cst {dimension_numbers = #tpu.dot_dimension_numbers<[1], [1], [0], [0], [0, 0, 1, 0], [], []>} : vector<16x32xf32>, vector<128x32xf32>, vector<16x128xf32> -> vector<16x128xf32>
    %7 = arith.addf %4, %6 : vector<16x128xf32>
    %c0_6 = arith.constant 0 : index
    %c0_7 = arith.constant 0 : index
    %8 = vector.load %arg9[%c0_6, %c0_7] : memref<16x128xf32, #tpu.memory_space<vmem>>, vector<16x128xf32>
    tpu.vector_store %arg9[%c0_6, %c0_7], %7 {strides = array<i32>} : memref<16x128xf32, #tpu.memory_space<vmem>>, vector<16x128xf32>,
    %c0_8 = arith.constant 0 : index
    %c0_9 = arith.constant 0 : index
    %9 = vector.load %arg10[%c0_8, %c0_9] : memref<16x128xf32, #tpu.memory_space<vmem>>, vector<16x128xf32>
    %c0_10 = arith.constant 0 : index
    %c0_11 = arith.constant 0 : index
    %10 = vector.load %arg6[%c0_10, %c0_11] : memref<32x128xf32, #tpu.memory_space<vmem>>, vector<32x128xf32>
    %cst_12 = arith.constant dense<0.000000e+00> : vector<16x128xf32>
    %11 = tpu.matmul %3, %10, %cst_12 {dimension_numbers = #tpu.dot_dimension_numbers<[1], [0], [0], [1], [0, 0, 1, 1], [], []>} : vector<16x32xf32>, vector<32x128xf32>, vector<16x128xf32> -> vector<16x128xf32>
    %12 = arith.addf %9, %11 : vector<16x128xf32>
    %c0_13 = arith.constant 0 : index
    %c0_14 = arith.constant 0 : index
    %13 = vector.load %arg10[%c0_13, %c0_14] : memref<16x128xf32, #tpu.memory_space<vmem>>, vector<16x128xf32>
    tpu.vector_store %arg10[%c0_13, %c0_14], %12 {strides = array<i32>} : memref<16x128xf32, #tpu.memory_space<vmem>>, vector<16x128xf32>,
    %c0_i32_15 = arith.constant 0 : i32
    %14 = arith.cmpi eq, %arg2, %c0_i32_15 : i32
    %15 = arith.extui %14 : i1 to i32
    %c0_i32_16 = arith.constant 0 : i32
    %16 = arith.cmpi ne, %15, %c0_i32_16 : i32
    scf.if %16 {
      %c0_17 = arith.constant 0 : index
      %c0_18 = arith.constant 0 : index
      %17 = vector.load %arg10[%c0_17, %c0_18] : memref<16x128xf32, #tpu.memory_space<vmem>>, vector<16x128xf32>
      %cst_19 = arith.constant 2.000000e+00 : f32
      %18 = vector.broadcast %cst_19 : f32 to vector<16x128xf32>
      %19 = arith.mulf %17, %18 : vector<16x128xf32>
      %c0_20 = arith.constant 0 : index
      %c0_21 = arith.constant 0 : index
      %20 = vector.load %arg7[%c0_20, %c0_21] : memref<128x128xf32, #tpu.memory_space<vmem>>, vector<128x128xf32>
      %cst_22 = arith.constant dense<0.000000e+00> : vector<16x128xf32>
      %21 = tpu.matmul %19, %20, %cst_22 {dimension_numbers = #tpu.dot_dimension_numbers<[1], [0], [0], [1], [0, 0, 1, 1], [], []>} : vector<16x128xf32>, vector<128x128xf32>, vector<16x128xf32> -> vector<16x128xf32>
      %c0_23 = arith.constant 0 : index
      %c0_24 = arith.constant 0 : index
      %22 = vector.load %arg9[%c0_23, %c0_24] : memref<16x128xf32, #tpu.memory_space<vmem>>, vector<16x128xf32>
      %23 = arith.addf %22, %21 : vector<16x128xf32>
      %c0_25 = arith.constant 0 : index
      %c0_26 = arith.constant 0 : index
      %24 = vector.load %arg5[%c0_25, %c0_26] : memref<1x128xf32, #tpu.memory_space<vmem>>, vector<1x128xf32>
      %25 = vector.broadcast %24 : vector<1x128xf32> to vector<16x128xf32>
      %26 = arith.addf %23, %25 : vector<16x128xf32>
      %c0_27 = arith.constant 0 : index
      %c0_28 = arith.constant 0 : index
      %27 = vector.load %arg8[%c0_27, %c0_28] : memref<16x128xf32, #tpu.memory_space<vmem>>, vector<16x128xf32>
      tpu.vector_store %arg8[%c0_27, %c0_28], %26 {strides = array<i32>} : memref<16x128xf32, #tpu.memory_space<vmem>>, vector<16x128xf32>,
    } else {
    }
    return
  }
  func.func @transform_0(%arg0: i32, %arg1: i32, %arg2: i32) -> (i32, i32) {
    %c0_i32 = arith.constant 0 : i32
    return %arg0, %arg2 : i32, i32
  }
  func.func @transform_1(%arg0: i32, %arg1: i32, %arg2: i32) -> (i32, i32) {
    %c0_i32 = arith.constant 0 : i32
    return %arg1, %arg2 : i32, i32
  }
  func.func @transform_2(%arg0: i32, %arg1: i32, %arg2: i32) -> (i32, i32) {
    %c0_i32 = arith.constant 0 : i32
    %c0_i32_0 = arith.constant 0 : i32
    return %c0_i32, %arg1 : i32, i32
  }
  func.func @transform_3(%arg0: i32, %arg1: i32, %arg2: i32) -> (i32, i32) {
    %c0_i32 = arith.constant 0 : i32
    %c0_i32_0 = arith.constant 0 : i32
    return %arg2, %c0_i32 : i32, i32
  }
  func.func @transform_4(%arg0: i32, %arg1: i32, %arg2: i32) -> (i32, i32) {
    %c0_i32 = arith.constant 0 : i32
    %c0_i32_0 = arith.constant 0 : i32
    return %c0_i32, %arg1 : i32, i32
  }
  func.func @transform_5(%arg0: i32, %arg1: i32, %arg2: i32) -> (i32, i32) {
    %c0_i32 = arith.constant 0 : i32
    return %arg0, %arg1 : i32, i32
  }
}

</mosaic_0001>

<llo_original>
// kernel: tpu_custom_call.1
$region0: #{tpu_custom_call.1}
  #allocation0 [shape = 'u32[]', space=smem, size = 0x4, offset = 0x4, fixed_abs, tag = 'smem constant byte address 0x4 - core index']
  #allocation1 [shape = 'u32[144,128]{1,0:T(1,128)}', space=vmem, size = 0x12000, scoped, tag = 'internal scratch']
  #allocation2 [shape = 'f32[16,128]{1,0:T(8,128)}', space=vmem, size = 0x2000, scoped, tag = 'scratch operand']
  #allocation3 [shape = 'f32[16,128]{1,0:T(8,128)}', space=vmem, size = 0x2000, scoped, tag = 'scratch operand']
  %s0 = inlined_call_operand.hbm [shape: f32[16,32], index: 0, kind: input, shape index: {}]
  %s1 = inlined_call_operand.vmem [shape: f32[128,32], index: 1, kind: input, shape index: {}]
  %s2 = inlined_call_operand.vmem [shape: f32[1,128], index: 2, kind: input, shape index: {}]
  %s3 = inlined_call_operand.vmem [shape: f32[32,128], index: 3, kind: input, shape index: {}]
  %s4 = inlined_call_operand.vmem [shape: f32[128,128], index: 4, kind: input, shape index: {}]
  %s5 = inlined_call_operand.hbm [shape: f32[16,128], index: 5, kind: output, shape index: {}]
  %s6 = sld [smem:[#allocation0]]
  $region42: #{tpu_custom_call.1} parent=0
    _
  %s8 = ssub.s32 1, %s6
  %s9 = scalar_select 0, %s8, %s6
  $region1: #{tpu_custom_call.1} parent=0
    #allocation4 [shape = 'u8[8192]{0}', space=vmem, size = 0x2000, scoped, tag = 'input window, operand 0, single buffered']
    #allocation5 [shape = 's32[1]{0}', space=sflag, size = 0x4, scoped, tag = 'scoped memory for tpu_custom_call.1']
    #allocation6 [shape = 's32[1]{0}', space=sflag, size = 0x4, scoped, tag = 'scoped memory for tpu_custom_call.1']
    #allocation7 [shape = 'u8[8192]{0}', space=vmem, size = 0x2000, scoped, tag = 'output window, operand 0, single buffered']
    %10 = vsyncpa [#allocation5], 0
    %11 = vsyncpa [#allocation6], 0
    // Predicated region
    $region2: #{tpu_custom_call.1} parent=1 // pred_check
      _
    $region3: #{tpu_custom_call.1} parent=1 // pred_check_branch
      %13 = sbr.rel (0) target = $region5
    $region4: #{tpu_custom_call.1} parent=1 // pred_region
      %s15 = ssub.s32 256, 256
      %16 = vsyncadd [#allocation5], %s15
      %s17 = sshll.u32 [#allocation4], 4
      %s18 = int_to_ptr.vmem [resolvable:$true] %s17
      %23 = dma.hbm_to_vmem [thread:$0]  %s0, 256, %s18, [#allocation5], 128, 128, 8
    $region5: #{tpu_custom_call.1} parent=1 // pred_fallthru
      _
    // Predicated region
    $region6: #{tpu_custom_call.1} parent=1 // pred_check
      _
    $region7: #{tpu_custom_call.1} parent=1 // pred_check_branch
      %25 = sbr.rel (0) target = $region9
    $region8: #{tpu_custom_call.1} parent=1 // pred_region
      _
    $region9: #{tpu_custom_call.1} parent=1 // pred_fallthru
      _
    // Predicated region
    $region10: #{tpu_custom_call.1} parent=1 // pred_check
      _
    $region11: #{tpu_custom_call.1} parent=1 // pred_check_branch
      %27 = sbr.rel (0) target = $region13
    $region12: #{tpu_custom_call.1} parent=1 // pred_region
      _
    $region13: #{tpu_custom_call.1} parent=1 // pred_fallthru
      _
    // Predicated region
    $region14: #{tpu_custom_call.1} parent=1 // pred_check
      _
    $region15: #{tpu_custom_call.1} parent=1 // pred_check_branch
      %29 = sbr.rel (0) target = $region17
    $region16: #{tpu_custom_call.1} parent=1 // pred_region
      _
    $region17: #{tpu_custom_call.1} parent=1 // pred_fallthru
      _
    // Predicated region
    $region18: #{tpu_custom_call.1} parent=1 // pred_check
      _
    $region19: #{tpu_custom_call.1} parent=1 // pred_check_branch
      %31 = sbr.rel (0) target = $region21
    $region20: #{tpu_custom_call.1} parent=1 // pred_region
      _
    $region21: #{tpu_custom_call.1} parent=1 // pred_fallthru
      _
    // Predicated region
    $region22: #{tpu_custom_call.1} parent=1 // pred_check
      _
    $region23: #{tpu_custom_call.1} parent=1 // pred_check_branch
      %33 = sbr.rel (0) target = $region25
    $region24: #{tpu_custom_call.1} parent=1 // pred_region
      %34 = dma.done [#allocation5], 256
    $region25: #{tpu_custom_call.1} parent=1 // pred_fallthru
      _
    %p35 = scmp.eq.s32.totalorder 0, 0
    // Predicated region
    $region26: #{tpu_custom_call.1} parent=1 // pred_check
      %p36 = pneg %p35
    $region27: #{tpu_custom_call.1} parent=1 // pred_check_branch
      %38 = sbr.rel (%p36) target = $region29
    $region28: #{tpu_custom_call.1} parent=1 // pred_region
      %39 = vst [vmem:[#allocation2] sm:$0xff] 0.0
      %40 = vst [vmem:[#allocation2 + $0x8] sm:$0xff] 0.0
      %41 = vst [vmem:[#allocation3] sm:$0xff] 0.0
      %42 = vst [vmem:[#allocation3 + $0x8] sm:$0xff] 0.0
    $region29: #{tpu_custom_call.1} parent=1 // pred_fallthru
      _
    %v43 = vld [vmem:[#allocation4] sm:$0xff]
    %v44 = vld [vmem:[#allocation4 + $0x8] sm:$0xff]
    %v45 = vld [vmem:[#allocation2] sm:$0xff]
    %v46 = vld [vmem:[#allocation2 + $0x8] sm:$0xff]
    %v47 = vld [vmem:[%s1] sm:$0xff]
    %v48 = vld [vmem:[%s1 + $0x8] sm:$0xff]
    %v49 = vld [vmem:[%s1 + $0x10] sm:$0xff]
    %v50 = vld [vmem:[%s1 + $0x18] sm:$0xff]
    %v51 = vld [vmem:[%s1 + $0x20] sm:$0xff]
    %v52 = vld [vmem:[%s1 + $0x28] sm:$0xff]
    %v53 = vld [vmem:[%s1 + $0x30] sm:$0xff]
    %v54 = vld [vmem:[%s1 + $0x38] sm:$0xff]
    %v55 = vld [vmem:[%s1 + $0x40] sm:$0xff]
    %v56 = vld [vmem:[%s1 + $0x48] sm:$0xff]
    %v57 = vld [vmem:[%s1 + $0x50] sm:$0xff]
    %v58 = vld [vmem:[%s1 + $0x58] sm:$0xff]
    %v59 = vld [vmem:[%s1 + $0x60] sm:$0xff]
    %v60 = vld [vmem:[%s1 + $0x68] sm:$0xff]
    %v61 = vld [vmem:[%s1 + $0x70] sm:$0xff]
    %v62 = vld [vmem:[%s1 + $0x78] sm:$0xff]
    %vm63 = vcmask 261120
    %v65 = vsel %vm63, %v43, 0
    %v68 = vsel %vm63, %v44, 0
    %v71 = vsel %vm63, %v47, 0
    %v74 = vsel %vm63, %v48, 0
    %v77 = vsel %vm63, %v49, 0
    %v80 = vsel %vm63, %v50, 0
    %v83 = vsel %vm63, %v51, 0
    %v86 = vsel %vm63, %v52, 0
    %v89 = vsel %vm63, %v53, 0
    %v92 = vsel %vm63, %v54, 0
    %v95 = vsel %vm63, %v55, 0
    %v98 = vsel %vm63, %v56, 0
    %v101 = vsel %vm63, %v57, 0
    %v104 = vsel %vm63, %v58, 0
    %v107 = vsel %vm63, %v59, 0
    %v110 = vsel %vm63, %v60, 0
    %v113 = vsel %vm63, %v61, 0
    %v116 = vsel %vm63, %v62, 0
    %118 = vmatprep.subr.mxu0 0.0
    %119 = vmatpush1.xpose.msra.mxu0 %v71
    %120 = vmatprep.subr.mxu0 0.0
    %121 = vmatpush1.xpose.msra.mxu0 %v74
    %122 = vmatprep.subr.mxu0 0.0
    %123 = vmatpush1.xpose.msra.mxu0 %v77
    %124 = vmatprep.subr.mxu0 0.0
    %125 = vmatpush1.xpose.msra.mxu0 %v80
    %126 = vmatprep.subr.mxu0 0.0
    %127 = vmatpush1.xpose.msra.mxu0 %v83
    %128 = vmatprep.subr.mxu0 0.0
    %129 = vmatpush1.xpose.msra.mxu0 %v86
    %130 = vmatprep.subr.mxu0 0.0
    %131 = vmatpush1.xpose.msra.mxu0 %v89
    %132 = vmatprep.subr.mxu0 0.0
    %133 = vmatpush1.xpose.msra.mxu0 %v92
    %134 = vmatprep.subr.mxu0 0.0
    %135 = vmatpush1.xpose.msra.mxu0 %v95
    %136 = vmatprep.subr.mxu0 0.0
    %137 = vmatpush1.xpose.msra.mxu0 %v98
    %138 = vmatprep.subr.mxu0 0.0
    %139 = vmatpush1.xpose.msra.mxu0 %v101
    %140 = vmatprep.subr.mxu0 0.0
    %141 = vmatpush1.xpose.msra.mxu0 %v104
    %142 = vmatprep.subr.mxu0 0.0
    %143 = vmatpush1.xpose.msra.mxu0 %v107
    %144 = vmatprep.subr.mxu0 0.0
    %145 = vmatpush1.xpose.msra.mxu0 %v110
    %146 = vmatprep.subr.mxu0 0.0
    %147 = vmatpush1.xpose.msra.mxu0 %v113
    %148 = vmatprep.subr.mxu0 0.0
    %149 = vmatpush1.xpose.msra.mxu0 %v116
    %150 = vmatprep.subr.mxu0 0.0
    %151 = vmatpush1.xpose.msra.mxu0 0.0
    %152 = vmatprep.subr.mxu0 0.0
    %153 = vmatpush1.xpose.msra.mxu0 0.0
    %154 = vmatprep.subr.mxu0 0.0
    %155 = vmatpush1.xpose.msra.mxu0 0.0
    %156 = vmatprep.subr.mxu0 0.0
    %157 = vmatpush1.xpose.msra.mxu0 0.0
    %158 = vmatprep.subr.mxu0 0.0
    %159 = vmatpush1.xpose.msra.mxu0 0.0
    %160 = vmatprep.subr.mxu0 0.0
    %161 = vmatpush1.xpose.msra.mxu0 0.0
    %162 = vmatprep.subr.mxu0 0.0
    %163 = vmatpush1.xpose.msra.mxu0 0.0
    %164 = vmatprep.subr.mxu0 0.0
    %165 = vmatpush1.xpose.msra.mxu0 0.0
    %166 = vmatprep.subr.mxu0 0.0
    %167 = vmatpush1.xpose.msra.mxu0 0.0
    %168 = vmatprep.subr.mxu0 0.0
    %169 = vmatpush1.xpose.msra.mxu0 0.0
    %170 = vmatprep.subr.mxu0 0.0
    %171 = vmatpush1.xpose.msra.mxu0 0.0
    %172 = vmatprep.subr.mxu0 0.0
    %173 = vmatpush1.xpose.msra.mxu0 0.0
    %174 = vmatprep.subr.mxu0 0.0
    %175 = vmatpush1.xpose.msra.mxu0 0.0
    %176 = vmatprep.subr.mxu0 0.0
    %177 = vmatpush1.xpose.msra.mxu0 0.0
    %178 = vmatprep.subr.mxu0 0.0
    %179 = vmatpush1.xpose.msra.mxu0 0.0
    %180 = vmatprep.subr.mxu0 0.0
    %181 = vmatpush1.xpose.msra.mxu0 0.0
    %182 = vmatprep.mubr.f32.mxu0 0.0
    %183 = vmatmul.mubr.f32.gmra.mrb[0].mxu0 %v65
    %v184 = vpop.f32.mrb[0].mxu0
    %v185 = vadd.f32 0.0, %v184
    %v186 = vpop.f32.mrb[0].mxu0
    %187 = vmatprep.mubr.f32.mxu0 0.0
    %188 = vmatmul.mubr.f32.gmra.mrb[0].mxu0 %v68
    %v189 = vpop.f32.mrb[0].mxu0
    %v190 = vadd.f32 0.0, %v189
    %v191 = vpop.f32.mrb[0].mxu0
    %192 = vdwg.mxu0
    %v193 = vadd.f32 %v45, %v185
    %v194 = vadd.f32 %v46, %v190
    %195 = vst [vmem:[#allocation2] sm:$0xff] %v193
    %196 = vst [vmem:[#allocation2 + $0x8] sm:$0xff] %v194
    %v197 = vld [vmem:[#allocation3] sm:$0xff]
    %v198 = vld [vmem:[#allocation3 + $0x8] sm:$0xff]
    %v199 = vld [vmem:[%s3] sm:$0xff]
    %v200 = vld [vmem:[%s3 + $0x8] sm:$0xff]
    %v201 = vld [vmem:[%s3 + $0x10] sm:$0xff]
    %v202 = vld [vmem:[%s3 + $0x18] sm:$0xff]
    %203 = vmatprep.subr.mxu0 0.0
    %204 = vmatpush1.msra.mxu0 %v199
    %205 = vmatprep.subr.mxu0 0.0
    %206 = vmatpush1.msra.mxu0 %v200
    %207 = vmatprep.subr.mxu0 0.0
    %208 = vmatpush1.msra.mxu0 %v201
    %209 = vmatprep.subr.mxu0 0.0
    %210 = vmatpush1.msra.mxu0 %v202
    %211 = vmatprep.subr.mxu0 0.0
    %212 = vmatpush1.msra.mxu0 0.0
    %213 = vmatprep.subr.mxu0 0.0
    %214 = vmatpush1.msra.mxu0 0.0
    %215 = vmatprep.subr.mxu0 0.0
    %216 = vmatpush1.msra.mxu0 0.0
    %217 = vmatprep.subr.mxu0 0.0
    %218 = vmatpush1.msra.mxu0 0.0
    %219 = vmatprep.subr.mxu0 0.0
    %220 = vmatpush1.msra.mxu0 0.0
    %221 = vmatprep.subr.mxu0 0.0
    %222 = vmatpush1.msra.mxu0 0.0
    %223 = vmatprep.subr.mxu0 0.0
    %224 = vmatpush1.msra.mxu0 0.0
    %225 = vmatprep.subr.mxu0 0.0
    %226 = vmatpush1.msra.mxu0 0.0
    %227 = vmatprep.subr.mxu0 0.0
    %228 = vmatpush1.msra.mxu0 0.0
    %229 = vmatprep.subr.mxu0 0.0
    %230 = vmatpush1.msra.mxu0 0.0
    %231 = vmatprep.subr.mxu0 0.0
    %232 = vmatpush1.msra.mxu0 0.0
    %233 = vmatprep.subr.mxu0 0.0
    %234 = vmatpush1.msra.mxu0 0.0
    %235 = vmatprep.subr.mxu0 0.0
    %236 = vmatpush1.msra.mxu0 0.0
    %237 = vmatprep.subr.mxu0 0.0
    %238 = vmatpush1.msra.mxu0 0.0
    %239 = vmatprep.subr.mxu0 0.0
    %240 = vmatpush1.msra.mxu0 0.0
    %241 = vmatprep.subr.mxu0 0.0
    %242 = vmatpush1.msra.mxu0 0.0
    %243 = vmatprep.subr.mxu0 0.0
    %244 = vmatpush1.msra.mxu0 0.0
    %245 = vmatprep.subr.mxu0 0.0
    %246 = vmatpush1.msra.mxu0 0.0
    %247 = vmatprep.subr.mxu0 0.0
    %248 = vmatpush1.msra.mxu0 0.0
    %249 = vmatprep.subr.mxu0 0.0
    %250 = vmatpush1.msra.mxu0 0.0
    %251 = vmatprep.subr.mxu0 0.0
    %252 = vmatpush1.msra.mxu0 0.0
    %253 = vmatprep.subr.mxu0 0.0
    %254 = vmatpush1.msra.mxu0 0.0
    %255 = vmatprep.subr.mxu0 0.0
    %256 = vmatpush1.msra.mxu0 0.0
    %257 = vmatprep.subr.mxu0 0.0
    %258 = vmatpush1.msra.mxu0 0.0
    %259 = vmatprep.subr.mxu0 0.0
    %260 = vmatpush1.msra.mxu0 0.0
    %261 = vmatprep.subr.mxu0 0.0
    %262 = vmatpush1.msra.mxu0 0.0
    %263 = vmatprep.subr.mxu0 0.0
    %264 = vmatpush1.msra.mxu0 0.0
    %265 = vmatprep.subr.mxu0 0.0
    %266 = vmatpush1.msra.mxu0 0.0
    %267 = vmatprep.mubr.f32.mxu0 0.0
    %268 = vmatmul.mubr.f32.gmra.mrb[0].mxu0 %v65
    %v269 = vpop.f32.mrb[0].mxu0
    %v270 = vadd.f32 0.0, %v269
    %v271 = vpop.f32.mrb[0].mxu0
    %272 = vmatprep.mubr.f32.mxu0 0.0
    %273 = vmatmul.mubr.f32.gmra.mrb[0].mxu0 %v68
    %v274 = vpop.f32.mrb[0].mxu0
    %v275 = vadd.f32 0.0, %v274
    %v276 = vpop.f32.mrb[0].mxu0
    %277 = vdwg.mxu0
    %v278 = vadd.f32 %v197, %v270
    %v279 = vadd.f32 %v198, %v275
    %280 = vst [vmem:[#allocation3] sm:$0xff] %v278
    %281 = vst [vmem:[#allocation3 + $0x8] sm:$0xff] %v279
    // Predicated region
    $region30: #{tpu_custom_call.1} parent=1 // pred_check
      %p282 = pneg %p35
    $region31: #{tpu_custom_call.1} parent=1 // pred_check_branch
      %284 = sbr.rel (%p282) target = $region33
    $region32: #{tpu_custom_call.1} parent=1 // pred_region
      %v285 = vld [vmem:[#allocation3] sm:$0xff]
      %v286 = vld [vmem:[#allocation3 + $0x8] sm:$0xff]
      %v287 = vmul.f32 %v285, 2.0
      %v288 = vmul.f32 %v286, 2.0
      %v289 = vld [vmem:[%s4] sm:$0xff]
      %v290 = vld [vmem:[%s4 + $0x8] sm:$0xff]
      %v291 = vld [vmem:[%s4 + $0x10] sm:$0xff]
      %v292 = vld [vmem:[%s4 + $0x18] sm:$0xff]
      %v293 = vld [vmem:[%s4 + $0x20] sm:$0xff]
      %v294 = vld [vmem:[%s4 + $0x28] sm:$0xff]
      %v295 = vld [vmem:[%s4 + $0x30] sm:$0xff]
      %v296 = vld [vmem:[%s4 + $0x38] sm:$0xff]
      %v297 = vld [vmem:[%s4 + $0x40] sm:$0xff]
      %v298 = vld [vmem:[%s4 + $0x48] sm:$0xff]
      %v299 = vld [vmem:[%s4 + $0x50] sm:$0xff]
      %v300 = vld [vmem:[%s4 + $0x58] sm:$0xff]
      %v301 = vld [vmem:[%s4 + $0x60] sm:$0xff]
      %v302 = vld [vmem:[%s4 + $0x68] sm:$0xff]
      %v303 = vld [vmem:[%s4 + $0x70] sm:$0xff]
      %v304 = vld [vmem:[%s4 + $0x78] sm:$0xff]
      %305 = vmatprep.subr.mxu0 0.0
      %306 = vmatpush1.msra.mxu0 %v289
      %307 = vmatprep.subr.mxu0 0.0
      %308 = vmatpush1.msra.mxu0 %v290
      %309 = vmatprep.subr.mxu0 0.0
      %310 = vmatpush1.msra.mxu0 %v291
      %311 = vmatprep.subr.mxu0 0.0
      %312 = vmatpush1.msra.mxu0 %v292
      %313 = vmatprep.subr.mxu0 0.0
      %314 = vmatpush1.msra.mxu0 %v293
      %315 = vmatprep.subr.mxu0 0.0
      %316 = vmatpush1.msra.mxu0 %v294
      %317 = vmatprep.subr.mxu0 0.0
      %318 = vmatpush1.msra.mxu0 %v295
      %319 = vmatprep.subr.mxu0 0.0
      %320 = vmatpush1.msra.mxu0 %v296
      %321 = vmatprep.subr.mxu0 0.0
      %322 = vmatpush1.msra.mxu0 %v297
      %323 = vmatprep.subr.mxu0 0.0
      %324 = vmatpush1.msra.mxu0 %v298
      %325 = vmatprep.subr.mxu0 0.0
      %326 = vmatpush1.msra.mxu0 %v299
      %327 = vmatprep.subr.mxu0 0.0
      %328 = vmatpush1.msra.mxu0 %v300
      %329 = vmatprep.subr.mxu0 0.0
      %330 = vmatpush1.msra.mxu0 %v301
      %331 = vmatprep.subr.mxu0 0.0
      %332 = vmatpush1.msra.mxu0 %v302
      %333 = vmatprep.subr.mxu0 0.0
      %334 = vmatpush1.msra.mxu0 %v303
      %335 = vmatprep.subr.mxu0 0.0
      %336 = vmatpush1.msra.mxu0 %v304
      %337 = vmatprep.subr.mxu0 0.0
      %338 = vmatpush1.msra.mxu0 0.0
      %339 = vmatprep.subr.mxu0 0.0
      %340 = vmatpush1.msra.mxu0 0.0
      %341 = vmatprep.subr.mxu0 0.0
      %342 = vmatpush1.msra.mxu0 0.0
      %343 = vmatprep.subr.mxu0 0.0
      %344 = vmatpush1.msra.mxu0 0.0
      %345 = vmatprep.subr.mxu0 0.0
      %346 = vmatpush1.msra.mxu0 0.0
      %347 = vmatprep.subr.mxu0 0.0
      %348 = vmatpush1.msra.mxu0 0.0
      %349 = vmatprep.subr.mxu0 0.0
      %350 = vmatpush1.msra.mxu0 0.0
      %351 = vmatprep.subr.mxu0 0.0
      %352 = vmatpush1.msra.mxu0 0.0
      %353 = vmatprep.subr.mxu0 0.0
      %354 = vmatpush1.msra.mxu0 0.0
      %355 = vmatprep.subr.mxu0 0.0
      %356 = vmatpush1.msra.mxu0 0.0
      %357 = vmatprep.subr.mxu0 0.0
      %358 = vmatpush1.msra.mxu0 0.0
      %359 = vmatprep.subr.mxu0 0.0
      %360 = vmatpush1.msra.mxu0 0.0
      %361 = vmatprep.subr.mxu0 0.0
      %362 = vmatpush1.msra.mxu0 0.0
      %363 = vmatprep.subr.mxu0 0.0
      %364 = vmatpush1.msra.mxu0 0.0
      %365 = vmatprep.subr.mxu0 0.0
      %366 = vmatpush1.msra.mxu0 0.0
      %367 = vmatprep.subr.mxu0 0.0
      %368 = vmatpush1.msra.mxu0 0.0
      %369 = vmatprep.mubr.f32.mxu0 0.0
      %370 = vmatmul.mubr.f32.gmra.mrb[0].mxu0 %v287
      %v371 = vpop.f32.mrb[0].mxu0
      %v372 = vadd.f32 0.0, %v371
      %v373 = vpop.f32.mrb[0].mxu0
      %374 = vmatprep.mubr.f32.mxu0 0.0
      %375 = vmatmul.mubr.f32.gmra.mrb[0].mxu0 %v288
      %v376 = vpop.f32.mrb[0].mxu0
      %v377 = vadd.f32 0.0, %v376
      %v378 = vpop.f32.mrb[0].mxu0
      %379 = vdwg.mxu0
      %v380 = vld [vmem:[#allocation2] sm:$0xff]
      %v381 = vld [vmem:[#allocation2 + $0x8] sm:$0xff]
      %v382 = vadd.f32 %v380, %v372
      %v383 = vadd.f32 %v381, %v377
      %v384 = vld [vmem:[%s2] sm:$0x1]
      %v386 = vlaneseq
      %v387 = vshrl.u32 %v386, 7
      %v388 = vsub.s32 0, %v387
      %v389 = vrot.slane %v384, %v388
      %v391 = vadd.f32 %v382, %v389
      %v392 = vadd.f32 %v383, %v389
      %393 = vst [vmem:[#allocation7] sm:$0xff] %v391
      %394 = vst [vmem:[#allocation7 + $0x8] sm:$0xff] %v392
    $region33: #{tpu_custom_call.1} parent=1 // pred_fallthru
      _
    // Predicated region
    $region34: #{tpu_custom_call.1} parent=1 // pred_check
      _
    $region35: #{tpu_custom_call.1} parent=1 // pred_check_branch
      %396 = sbr.rel (0) target = $region37
    $region36: #{tpu_custom_call.1} parent=1 // pred_region
      %s398 = ssub.s32 256, 256
      %399 = vsyncadd [#allocation6], %s398
      %s400 = sshll.u32 [#allocation7], 4
      %s401 = int_to_ptr.vmem [resolvable:$true] %s400
      %406 = dma.vmem_to_hbm [thread:$0]  %s401, 256, %s5, [#allocation6], 128, 128, 8
    $region37: #{tpu_custom_call.1} parent=1 // pred_fallthru
      _
    // Predicated region
    $region38: #{tpu_custom_call.1} parent=1 // pred_check
      _
    $region39: #{tpu_custom_call.1} parent=1 // pred_check_branch
      %408 = sbr.rel (0) target = $region41
    $region40: #{tpu_custom_call.1} parent=1 // pred_region
      %409 = dma.done [#allocation6], 256
    $region41: #{tpu_custom_call.1} parent=1 // pred_fallthru
      _
    %410 = vsyncpa [#allocation5], 1
    %411 = vsyncpa [#allocation6], 1

</llo_original>
